<compile_context>
chip_gen: v7x
topology: tpu7x:2x2x1
jax: 0.10.0
libtpu: 0.0.40
codegen_flags: <defaults>
</compile_context>

<pallas_src>
import jax
import jax.numpy as jnp
from jax.experimental import pallas as pl
from jax.experimental.pallas import tpu as pltpu

EPS = 1e-5  # nn.InstanceNorm2d default eps


def _instance_norm_rows(t):
    """Normalize each row of a (rows, HW) tile over the lane (HW) axis."""
    mu = jnp.mean(t, axis=-1, keepdims=True)
    tc = t - mu                                    # centered; reused for var + normalize
    var = jnp.mean(tc * tc, axis=-1, keepdims=True)
    return tc * jax.lax.rsqrt(var + EPS)


def ffn_kernel(x_ref, w1t_ref, w2t_ref, o_ref):
    # x_ref/o_ref: (N, C, HW);  w1t_ref: (Hid, C);  w2t_ref: (C, Hid)
    w1t = w1t_ref[...]
    w2t = w2t_ref[...]
    n_batch = x_ref.shape[0]
    for n in range(n_batch):                       # static, tiny N -> unrolled
        x = x_ref[n]                               # (C, HW) f32
        # fc1: 1x1 conv == channel matmul (bias cancelled by following InstanceNorm)
        h = jnp.dot(w1t, x, preferred_element_type=jnp.float32)   # (Hid, HW)
        h = _instance_norm_rows(h)                 # InstanceNorm2d(affine=False)
        h = jnp.maximum(h, 0.0)                    # ReLU
        # fc2: 1x1 conv (bias cancelled by following InstanceNorm)
        y = jnp.dot(w2t, h, preferred_element_type=jnp.float32)   # (C, HW)
        y = _instance_norm_rows(y)
        # drop_path is Identity; residual add
        o_ref[n] = y + x


def ffn_pallas(x_nchw, w1, b1, w2, b2):
    """x_nchw: (N, C, H, W) f32. w1: (Cin, Hid), b1: (Hid,), w2: (Hid, Cout), b2: (Cout,)."""
    N, C, H, W = x_nchw.shape
    HW = H * W
    hid = w1.shape[1]
    cout = w2.shape[1]
    assert cout == C, "residual add requires out_features == in_features"

    # Biases are mathematically exact no-ops: InstanceNorm(affine=False) subtracts
    # the per-channel mean right after the conv, absorbing the constant bias.
    del b1, b2

    x = x_nchw.reshape(N, C, HW)                   # free reshape, channels stay on sublanes
    w1t = jnp.transpose(w1)                        # (hid, C)   -- tiny
    w2t = jnp.transpose(w2)                        # (C, hid)   -- tiny

    out = pl.pallas_call(
        ffn_kernel,
        out_shape=jax.ShapeDtypeStruct((N, C, HW), jnp.float32),
        # No grid: whole batch + weights resident in VMEM (a few KiB at these shapes).
        compiler_params=pltpu.CompilerParams(vmem_limit_bytes=32 * 1024 * 1024),
    )(x, w1t, w2t)

    return out.reshape(N, C, H, W)                 # free reshape back to NCHW


def ffn_reference(x_nchw, w1, b1, w2, b2):
    """Pure-JAX reference matching the PyTorch module (keeps the biases)."""
    def inorm(t):  # t: (N, C, H, W)
        mu = jnp.mean(t, axis=(2, 3), keepdims=True)
        var = jnp.mean((t - mu) ** 2, axis=(2, 3), keepdims=True)
        return (t - mu) * jax.lax.rsqrt(var + EPS)

    def conv1x1(t, w, b):  # w: (Cin, Cout)
        y = jnp.einsum("nchw,cd->ndhw", t, w)
        return y + b[None, :, None, None]

    h = inorm(conv1x1(x_nchw, w1, b1))
    h = jnp.maximum(h, 0.0)
    y = inorm(conv1x1(h, w2, b2))
    return y + x_nchw


if __name__ == "__main__":
    # batch=2, in_features=out_features=4, hidden_features=32, 16x16 spatial.
    N, C, H, W = 2, 4, 16, 16
    HID = 32

    key = jax.random.PRNGKey(0)
    kx, kw1, kb1, kw2, kb2 = jax.random.split(key, 5)

    x = jax.random.normal(kx, (N, C, H, W), dtype=jnp.float32)
    w1 = jax.random.normal(kw1, (C, HID), dtype=jnp.float32) * 0.1
    b1 = jax.random.normal(kb1, (HID,), dtype=jnp.float32) * 0.1
    w2 = jax.random.normal(kw2, (HID, C), dtype=jnp.float32) * 0.1
    b2 = jax.random.normal(kb2, (C,), dtype=jnp.float32) * 0.1

    out = jax.block_until_ready(ffn_pallas(x, w1, b1, w2, b2))
    ref = jax.block_until_ready(ffn_reference(x, w1, b1, w2, b2))

    assert out.shape == (N, C, H, W)
    assert jnp.max(jnp.abs(out - ref)) < 1e-4, "mismatch vs reference"
    print("KERNEL_OK")
</pallas_src>

<mosaic_0001>
module attributes {stable_mosaic.version = 11 : i64} {
  func.func @ffn_kernel(%arg0: memref<2x4x256xf32, #tpu.memory_space<vmem>>, %arg1: memref<32x4xf32, #tpu.memory_space<vmem>>, %arg2: memref<4x32xf32, #tpu.memory_space<vmem>>, %arg3: memref<2x4x256xf32, #tpu.memory_space<vmem>>) attributes {dimension_semantics = [], scalar_prefetch = 0 : i64, scratch_operands = 0 : i64, tpu.core_type = #tpu.core_type<tc>} {
    %c0 = arith.constant 0 : index
    %c0_0 = arith.constant 0 : index
    %0 = vector.load %arg1[%c0, %c0_0] : memref<32x4xf32, #tpu.memory_space<vmem>>, vector<32x4xf32>
    %c0_1 = arith.constant 0 : index
    %c0_2 = arith.constant 0 : index
    %1 = vector.load %arg2[%c0_1, %c0_2] : memref<4x32xf32, #tpu.memory_space<vmem>>, vector<4x32xf32>
    %c0_3 = arith.constant 0 : index
    %c0_4 = arith.constant 0 : index
    %c0_5 = arith.constant 0 : index
    %2 = vector.load %arg0[%c0_3, %c0_4, %c0_5] : memref<2x4x256xf32, #tpu.memory_space<vmem>>, vector<1x4x256xf32>
    %3 = vector.shape_cast %2 : vector<1x4x256xf32> to vector<4x256xf32>
    %cst = arith.constant dense<0.000000e+00> : vector<32x256xf32>
    %4 = tpu.matmul %0, %3, %cst {dimension_numbers = #tpu.dot_dimension_numbers<[1], [0], [0], [1], [0, 0, 1, 1], [], []>} : vector<32x4xf32>, vector<4x256xf32>, vector<32x256xf32> -> vector<32x256xf32>
    %cst_6 = arith.constant dense<0.000000e+00> : vector<32xf32>
    %5 = vector.multi_reduction <add>, %4, %cst_6 [1] : vector<32x256xf32> to vector<32xf32>
    %6 = vector.shape_cast %5 : vector<32xf32> to vector<32x1xf32>
    %cst_7 = arith.constant 2.560000e+02 : f32
    %7 = vector.broadcast %cst_7 : f32 to vector<32x1xf32>
    %8 = arith.divf %6, %7 : vector<32x1xf32>
    %9 = vector.broadcast %8 : vector<32x1xf32> to vector<32x256xf32>
    %10 = arith.subf %4, %9 : vector<32x256xf32>
    %11 = arith.mulf %10, %10 : vector<32x256xf32>
    %cst_8 = arith.constant dense<0.000000e+00> : vector<32xf32>
    %12 = vector.multi_reduction <add>, %11, %cst_8 [1] : vector<32x256xf32> to vector<32xf32>
    %13 = vector.shape_cast %12 : vector<32xf32> to vector<32x1xf32>
    %cst_9 = arith.constant 2.560000e+02 : f32
    %14 = vector.broadcast %cst_9 : f32 to vector<32x1xf32>
    %15 = arith.divf %13, %14 : vector<32x1xf32>
    %cst_10 = arith.constant 9.99999974E-6 : f32
    %16 = vector.broadcast %cst_10 : f32 to vector<32x1xf32>
    %17 = arith.addf %15, %16 : vector<32x1xf32>
    %18 = math.rsqrt %17 : vector<32x1xf32>
    %19 = vector.broadcast %18 : vector<32x1xf32> to vector<32x256xf32>
    %20 = arith.mulf %10, %19 : vector<32x256xf32>
    %cst_11 = arith.constant 0.000000e+00 : f32
    %21 = vector.broadcast %cst_11 : f32 to vector<32x256xf32>
    %22 = arith.maximumf %20, %21 : vector<32x256xf32>
    %cst_12 = arith.constant dense<0.000000e+00> : vector<4x256xf32>
    %23 = tpu.matmul %1, %22, %cst_12 {dimension_numbers = #tpu.dot_dimension_numbers<[1], [0], [0], [1], [0, 0, 1, 1], [], []>} : vector<4x32xf32>, vector<32x256xf32>, vector<4x256xf32> -> vector<4x256xf32>
    %cst_13 = arith.constant dense<0.000000e+00> : vector<4xf32>
    %24 = vector.multi_reduction <add>, %23, %cst_13 [1] : vector<4x256xf32> to vector<4xf32>
    %25 = vector.shape_cast %24 : vector<4xf32> to vector<4x1xf32>
    %cst_14 = arith.constant 2.560000e+02 : f32
    %26 = vector.broadcast %cst_14 : f32 to vector<4x1xf32>
    %27 = arith.divf %25, %26 : vector<4x1xf32>
    %28 = vector.broadcast %27 : vector<4x1xf32> to vector<4x256xf32>
    %29 = arith.subf %23, %28 : vector<4x256xf32>
    %30 = arith.mulf %29, %29 : vector<4x256xf32>
    %cst_15 = arith.constant dense<0.000000e+00> : vector<4xf32>
    %31 = vector.multi_reduction <add>, %30, %cst_15 [1] : vector<4x256xf32> to vector<4xf32>
    %32 = vector.shape_cast %31 : vector<4xf32> to vector<4x1xf32>
    %cst_16 = arith.constant 2.560000e+02 : f32
    %33 = vector.broadcast %cst_16 : f32 to vector<4x1xf32>
    %34 = arith.divf %32, %33 : vector<4x1xf32>
    %cst_17 = arith.constant 9.99999974E-6 : f32
    %35 = vector.broadcast %cst_17 : f32 to vector<4x1xf32>
    %36 = arith.addf %34, %35 : vector<4x1xf32>
    %37 = math.rsqrt %36 : vector<4x1xf32>
    %38 = vector.broadcast %37 : vector<4x1xf32> to vector<4x256xf32>
    %39 = arith.mulf %29, %38 : vector<4x256xf32>
    %40 = arith.addf %39, %3 : vector<4x256xf32>
    %c0_18 = arith.constant 0 : index
    %c0_19 = arith.constant 0 : index
    %c0_20 = arith.constant 0 : index
    %41 = vector.load %arg3[%c0_18, %c0_19, %c0_20] : memref<2x4x256xf32, #tpu.memory_space<vmem>>, vector<1x4x256xf32>
    %42 = vector.shape_cast %41 : vector<1x4x256xf32> to vector<4x256xf32>
    %43 = vector.shape_cast %40 : vector<4x256xf32> to vector<1x4x256xf32>
    tpu.vector_store %arg3[%c0_18, %c0_19, %c0_20], %43 {strides = array<i32>} : memref<2x4x256xf32, #tpu.memory_space<vmem>>, vector<1x4x256xf32>,
    %c1 = arith.constant 1 : index
    %c0_21 = arith.constant 0 : index
    %c0_22 = arith.constant 0 : index
    %44 = vector.load %arg0[%c1, %c0_21, %c0_22] : memref<2x4x256xf32, #tpu.memory_space<vmem>>, vector<1x4x256xf32>
    %45 = vector.shape_cast %44 : vector<1x4x256xf32> to vector<4x256xf32>
    %cst_23 = arith.constant dense<0.000000e+00> : vector<32x256xf32>
    %46 = tpu.matmul %0, %45, %cst_23 {dimension_numbers = #tpu.dot_dimension_numbers<[1], [0], [0], [1], [0, 0, 1, 1], [], []>} : vector<32x4xf32>, vector<4x256xf32>, vector<32x256xf32> -> vector<32x256xf32>
    %cst_24 = arith.constant dense<0.000000e+00> : vector<32xf32>
    %47 = vector.multi_reduction <add>, %46, %cst_24 [1] : vector<32x256xf32> to vector<32xf32>
    %48 = vector.shape_cast %47 : vector<32xf32> to vector<32x1xf32>
    %cst_25 = arith.constant 2.560000e+02 : f32
    %49 = vector.broadcast %cst_25 : f32 to vector<32x1xf32>
    %50 = arith.divf %48, %49 : vector<32x1xf32>
    %51 = vector.broadcast %50 : vector<32x1xf32> to vector<32x256xf32>
    %52 = arith.subf %46, %51 : vector<32x256xf32>
    %53 = arith.mulf %52, %52 : vector<32x256xf32>
    %cst_26 = arith.constant dense<0.000000e+00> : vector<32xf32>
    %54 = vector.multi_reduction <add>, %53, %cst_26 [1] : vector<32x256xf32> to vector<32xf32>
    %55 = vector.shape_cast %54 : vector<32xf32> to vector<32x1xf32>
    %cst_27 = arith.constant 2.560000e+02 : f32
    %56 = vector.broadcast %cst_27 : f32 to vector<32x1xf32>
    %57 = arith.divf %55, %56 : vector<32x1xf32>
    %cst_28 = arith.constant 9.99999974E-6 : f32
    %58 = vector.broadcast %cst_28 : f32 to vector<32x1xf32>
    %59 = arith.addf %57, %58 : vector<32x1xf32>
    %60 = math.rsqrt %59 : vector<32x1xf32>
    %61 = vector.broadcast %60 : vector<32x1xf32> to vector<32x256xf32>
    %62 = arith.mulf %52, %61 : vector<32x256xf32>
    %cst_29 = arith.constant 0.000000e+00 : f32
    %63 = vector.broadcast %cst_29 : f32 to vector<32x256xf32>
    %64 = arith.maximumf %62, %63 : vector<32x256xf32>
    %cst_30 = arith.constant dense<0.000000e+00> : vector<4x256xf32>
    %65 = tpu.matmul %1, %64, %cst_30 {dimension_numbers = #tpu.dot_dimension_numbers<[1], [0], [0], [1], [0, 0, 1, 1], [], []>} : vector<4x32xf32>, vector<32x256xf32>, vector<4x256xf32> -> vector<4x256xf32>
    %cst_31 = arith.constant dense<0.000000e+00> : vector<4xf32>
    %66 = vector.multi_reduction <add>, %65, %cst_31 [1] : vector<4x256xf32> to vector<4xf32>
    %67 = vector.shape_cast %66 : vector<4xf32> to vector<4x1xf32>
    %cst_32 = arith.constant 2.560000e+02 : f32
    %68 = vector.broadcast %cst_32 : f32 to vector<4x1xf32>
    %69 = arith.divf %67, %68 : vector<4x1xf32>
    %70 = vector.broadcast %69 : vector<4x1xf32> to vector<4x256xf32>
    %71 = arith.subf %65, %70 : vector<4x256xf32>
    %72 = arith.mulf %71, %71 : vector<4x256xf32>
    %cst_33 = arith.constant dense<0.000000e+00> : vector<4xf32>
    %73 = vector.multi_reduction <add>, %72, %cst_33 [1] : vector<4x256xf32> to vector<4xf32>
    %74 = vector.shape_cast %73 : vector<4xf32> to vector<4x1xf32>
    %cst_34 = arith.constant 2.560000e+02 : f32
    %75 = vector.broadcast %cst_34 : f32 to vector<4x1xf32>
    %76 = arith.divf %74, %75 : vector<4x1xf32>
    %cst_35 = arith.constant 9.99999974E-6 : f32
    %77 = vector.broadcast %cst_35 : f32 to vector<4x1xf32>
    %78 = arith.addf %76, %77 : vector<4x1xf32>
    %79 = math.rsqrt %78 : vector<4x1xf32>
    %80 = vector.broadcast %79 : vector<4x1xf32> to vector<4x256xf32>
    %81 = arith.mulf %71, %80 : vector<4x256xf32>
    %82 = arith.addf %81, %45 : vector<4x256xf32>
    %c1_36 = arith.constant 1 : index
    %c0_37 = arith.constant 0 : index
    %c0_38 = arith.constant 0 : index
    %83 = vector.load %arg3[%c1_36, %c0_37, %c0_38] : memref<2x4x256xf32, #tpu.memory_space<vmem>>, vector<1x4x256xf32>
    %84 = vector.shape_cast %83 : vector<1x4x256xf32> to vector<4x256xf32>
    %85 = vector.shape_cast %82 : vector<4x256xf32> to vector<1x4x256xf32>
    tpu.vector_store %arg3[%c1_36, %c0_37, %c0_38], %85 {strides = array<i32>} : memref<2x4x256xf32, #tpu.memory_space<vmem>>, vector<1x4x256xf32>,
    return
  }
}

</mosaic_0001>

<llo_original>
// kernel: tpu_custom_call.1
$region0: #{tpu_custom_call.1}
  #allocation0 [shape = 'u32[]', space=smem, size = 0x4, offset = 0x4, fixed_abs, tag = 'smem constant byte address 0x4 - core index']
  #allocation1 [shape = 'u32[144,128]{1,0:T(1,128)}', space=vmem, size = 0x12000, scoped, tag = 'internal scratch']
  %s0 = inlined_call_operand.vmem [shape: f32[2,4,256], index: 0, kind: input, shape index: {}]
  %s1 = inlined_call_operand.vmem [shape: f32[32,4], index: 1, kind: input, shape index: {}]
  %s2 = inlined_call_operand.vmem [shape: f32[4,32], index: 2, kind: input, shape index: {}]
  %s3 = inlined_call_operand.hbm [shape: f32[2,4,256], index: 3, kind: output, shape index: {}]
  %s4 = sld [smem:[#allocation0]]
  $region22: #{tpu_custom_call.1} parent=0
    _
  %s6 = ssub.s32 1, %s4
  %s7 = scalar_select 0, %s6, %s4
  $region1: #{tpu_custom_call.1} parent=0
    #allocation2 [shape = 'u8[8192]{0}', space=vmem, size = 0x2000, scoped, tag = 'output window, operand 0, single buffered']
    #allocation3 [shape = 's32[1]{0}', space=sflag, size = 0x4, scoped, tag = 'scoped memory for tpu_custom_call.1']
    %8 = vsyncpa [#allocation3], 0
    // Predicated region
    $region2: #{tpu_custom_call.1} parent=1 // pred_check
      _
    $region3: #{tpu_custom_call.1} parent=1 // pred_check_branch
      %10 = sbr.rel (0) target = $region5
    $region4: #{tpu_custom_call.1} parent=1 // pred_region
      _
    $region5: #{tpu_custom_call.1} parent=1 // pred_fallthru
      _
    // Predicated region
    $region6: #{tpu_custom_call.1} parent=1 // pred_check
      _
    $region7: #{tpu_custom_call.1} parent=1 // pred_check_branch
      %12 = sbr.rel (0) target = $region9
    $region8: #{tpu_custom_call.1} parent=1 // pred_region
      _
    $region9: #{tpu_custom_call.1} parent=1 // pred_fallthru
      _
    // Predicated region
    $region10: #{tpu_custom_call.1} parent=1 // pred_check
      _
    $region11: #{tpu_custom_call.1} parent=1 // pred_check_branch
      %14 = sbr.rel (0) target = $region13
    $region12: #{tpu_custom_call.1} parent=1 // pred_region
      _
    $region13: #{tpu_custom_call.1} parent=1 // pred_fallthru
      _
    %v15 = vld [vmem:[%s1] sm:$0xff]
    %v16 = vld [vmem:[%s1 + $0x8] sm:$0xff]
    %v17 = vld [vmem:[%s1 + $0x10] sm:$0xff]
    %v18 = vld [vmem:[%s1 + $0x18] sm:$0xff]
    %v19 = vld [vmem:[%s2] sm:$0xf]
    %v20 = vld [vmem:[%s0] sm:$0xff]
    %v22 = vcombine.high %v20, %v20
    %vm23 = vcmask 31744
    %v25 = vsel %vm23, %v15, 0
    %v28 = vsel %vm23, %v16, 0
    %v31 = vsel %vm23, %v17, 0
    %v34 = vsel %vm23, %v18, 0
    %vm36 = vcmask 1043456
    %v37 = vsel %vm36, %v20, 0
    %v39 = vsel %vm36, %v22, 0
    %41 = vmatprep.subr.mxu0 %v39
    %42 = vmatpush1.msra.mxu0 %v37
    %43 = vmatprep.subr.mxu0 0.0
    %44 = vmatpush1.msra.mxu0 0.0
    %45 = vmatprep.subr.mxu0 0.0
    %46 = vmatpush1.msra.mxu0 0.0
    %47 = vmatprep.subr.mxu0 0.0
    %48 = vmatpush1.msra.mxu0 0.0
    %49 = vmatprep.subr.mxu0 0.0
    %50 = vmatpush1.msra.mxu0 0.0
    %51 = vmatprep.subr.mxu0 0.0
    %52 = vmatpush1.msra.mxu0 0.0
    %53 = vmatprep.subr.mxu0 0.0
    %54 = vmatpush1.msra.mxu0 0.0
    %55 = vmatprep.subr.mxu0 0.0
    %56 = vmatpush1.msra.mxu0 0.0
    %57 = vmatprep.subr.mxu0 0.0
    %58 = vmatpush1.msra.mxu0 0.0
    %59 = vmatprep.subr.mxu0 0.0
    %60 = vmatpush1.msra.mxu0 0.0
    %61 = vmatprep.subr.mxu0 0.0
    %62 = vmatpush1.msra.mxu0 0.0
    %63 = vmatprep.subr.mxu0 0.0
    %64 = vmatpush1.msra.mxu0 0.0
    %65 = vmatprep.subr.mxu0 0.0
    %66 = vmatpush1.msra.mxu0 0.0
    %67 = vmatprep.subr.mxu0 0.0
    %68 = vmatpush1.msra.mxu0 0.0
    %69 = vmatprep.subr.mxu0 0.0
    %70 = vmatpush1.msra.mxu0 0.0
    %71 = vmatprep.subr.mxu0 0.0
    %72 = vmatpush1.msra.mxu0 0.0
    %73 = vmatprep.subr.mxu0 0.0
    %74 = vmatpush1.msra.mxu0 0.0
    %75 = vmatprep.subr.mxu0 0.0
    %76 = vmatpush1.msra.mxu0 0.0
    %77 = vmatprep.subr.mxu0 0.0
    %78 = vmatpush1.msra.mxu0 0.0
    %79 = vmatprep.subr.mxu0 0.0
    %80 = vmatpush1.msra.mxu0 0.0
    %81 = vmatprep.subr.mxu0 0.0
    %82 = vmatpush1.msra.mxu0 0.0
    %83 = vmatprep.subr.mxu0 0.0
    %84 = vmatpush1.msra.mxu0 0.0
    %85 = vmatprep.subr.mxu0 0.0
    %86 = vmatpush1.msra.mxu0 0.0
    %87 = vmatprep.subr.mxu0 0.0
    %88 = vmatpush1.msra.mxu0 0.0
    %89 = vmatprep.subr.mxu0 0.0
    %90 = vmatpush1.msra.mxu0 0.0
    %91 = vmatprep.subr.mxu0 0.0
    %92 = vmatpush1.msra.mxu0 0.0
    %93 = vmatprep.subr.mxu0 0.0
    %94 = vmatpush1.msra.mxu0 0.0
    %95 = vmatprep.subr.mxu0 0.0
    %96 = vmatpush1.msra.mxu0 0.0
    %97 = vmatprep.subr.mxu0 0.0
    %98 = vmatpush1.msra.mxu0 0.0
    %99 = vmatprep.subr.mxu0 0.0
    %100 = vmatpush1.msra.mxu0 0.0
    %101 = vmatprep.subr.mxu0 0.0
    %102 = vmatpush1.msra.mxu0 0.0
    %103 = vmatprep.subr.mxu0 0.0
    %104 = vmatpush1.msra.mxu0 0.0
    %105 = vmatprep.mubr.f32.mxu0 0.0
    %106 = vmatmul.mubr.f32.gmra.mrb[0].mxu0 %v25
    %v107 = vpop.f32.mrb[0].mxu0
    %v108 = vadd.f32 0.0, %v107
    %v109 = vpop.f32.mrb[0].mxu0
    %v110 = vadd.f32 0.0, %v109
    %111 = vmatprep.mubr.f32.mxu0 0.0
    %112 = vmatmul.mubr.f32.gmra.mrb[0].mxu0 %v28
    %v113 = vpop.f32.mrb[0].mxu0
    %v114 = vadd.f32 0.0, %v113
    %v115 = vpop.f32.mrb[0].mxu0
    %v116 = vadd.f32 0.0, %v115
    %117 = vmatprep.mubr.f32.mxu0 0.0
    %118 = vmatmul.mubr.f32.gmra.mrb[0].mxu0 %v31
    %v119 = vpop.f32.mrb[0].mxu0
    %v120 = vadd.f32 0.0, %v119
    %v121 = vpop.f32.mrb[0].mxu0
    %v122 = vadd.f32 0.0, %v121
    %123 = vmatprep.mubr.f32.mxu0 0.0
    %124 = vmatmul.mubr.f32.gmra.mrb[0].mxu0 %v34
    %v125 = vpop.f32.mrb[0].mxu0
    %v126 = vadd.f32 0.0, %v125
    %v127 = vpop.f32.mrb[0].mxu0
    %v128 = vadd.f32 0.0, %v127
    %129 = vdwg.mxu0
    %v130 = vadd.f32 %v108, %v110
    %131 = vadd.xlane.f32.xlu0 %v130
    %v132 = vpop.xlane.xlu0 %131
    %v133 = vadd.f32 %v114, %v116
    %134 = vadd.xlane.f32.xlu0 %v133
    %v135 = vpop.xlane.xlu0 %134
    %v136 = vadd.f32 %v120, %v122
    %137 = vadd.xlane.f32.xlu0 %v136
    %v138 = vpop.xlane.xlu0 %137
    %v139 = vadd.f32 %v126, %v128
    %140 = vadd.xlane.f32.xlu0 %v139
    %v141 = vpop.xlane.xlu0 %140
    %v142 = vrcp.pop 256.0
    %v143 = vmul.f32 %v132, %v142
    %v144 = vmul.f32 %v135, %v142
    %v145 = vmul.f32 %v138, %v142
    %v146 = vmul.f32 %v141, %v142
    %v147 = vsub.f32 %v108, %v143
    %v148 = vsub.f32 %v110, %v143
    %v149 = vsub.f32 %v114, %v144
    %v150 = vsub.f32 %v116, %v144
    %v151 = vsub.f32 %v120, %v145
    %v152 = vsub.f32 %v122, %v145
    %v153 = vsub.f32 %v126, %v146
    %v154 = vsub.f32 %v128, %v146
    %v155 = vmul.f32 %v147, %v147
    %v156 = vmul.f32 %v148, %v148
    %v157 = vmul.f32 %v149, %v149
    %v158 = vmul.f32 %v150, %v150
    %v159 = vmul.f32 %v151, %v151
    %v160 = vmul.f32 %v152, %v152
    %v161 = vmul.f32 %v153, %v153
    %v162 = vmul.f32 %v154, %v154
    %v163 = vadd.f32 %v155, %v156
    %164 = vadd.xlane.f32.xlu0 %v163
    %v165 = vpop.xlane.xlu0 %164
    %v166 = vadd.f32 %v157, %v158
    %167 = vadd.xlane.f32.xlu0 %v166
    %v168 = vpop.xlane.xlu0 %167
    %v169 = vadd.f32 %v159, %v160
    %170 = vadd.xlane.f32.xlu0 %v169
    %v171 = vpop.xlane.xlu0 %170
    %v172 = vadd.f32 %v161, %v162
    %173 = vadd.xlane.f32.xlu0 %v172
    %v174 = vpop.xlane.xlu0 %173
    %v175 = vmul.f32 %v165, %v142
    %v176 = vmul.f32 %v168, %v142
    %v177 = vmul.f32 %v171, %v142
    %v178 = vmul.f32 %v174, %v142
    %v179 = vadd.f32 %v175, 1e-05
    %v180 = vadd.f32 %v176, 1e-05
    %v181 = vadd.f32 %v177, 1e-05
    %v182 = vadd.f32 %v178, 1e-05
    %v183 = vrsqrt.pop %v179
    %v184 = vrsqrt.pop %v180
    %v185 = vrsqrt.pop %v181
    %v186 = vrsqrt.pop %v182
    %v187 = vmul.f32 %v147, %v183
    %v188 = vmul.f32 %v148, %v183
    %v189 = vmul.f32 %v149, %v184
    %v190 = vmul.f32 %v150, %v184
    %v191 = vmul.f32 %v151, %v185
    %v192 = vmul.f32 %v152, %v185
    %v193 = vmul.f32 %v153, %v186
    %v194 = vmul.f32 %v154, %v186
    %v195 = vmax.f32 %v187, 0.0
    %v196 = vmax.f32 %v188, 0.0
    %v197 = vmax.f32 %v189, 0.0
    %v198 = vmax.f32 %v190, 0.0
    %v199 = vmax.f32 %v191, 0.0
    %v200 = vmax.f32 %v192, 0.0
    %v201 = vmax.f32 %v193, 0.0
    %v202 = vmax.f32 %v194, 0.0
    %vm203 = vcmask 261120
    %v205 = vsel %vm203, %v19, 0
    %207 = vmatprep.subr.mxu0 %v196
    %208 = vmatpush1.msra.mxu0 %v195
    %209 = vmatprep.subr.mxu0 %v198
    %210 = vmatpush1.msra.mxu0 %v197
    %211 = vmatprep.subr.mxu0 %v200
    %212 = vmatpush1.msra.mxu0 %v199
    %213 = vmatprep.subr.mxu0 %v202
    %214 = vmatpush1.msra.mxu0 %v201
    %215 = vmatprep.subr.mxu0 0.0
    %216 = vmatpush1.msra.mxu0 0.0
    %217 = vmatprep.subr.mxu0 0.0
    %218 = vmatpush1.msra.mxu0 0.0
    %219 = vmatprep.subr.mxu0 0.0
    %220 = vmatpush1.msra.mxu0 0.0
    %221 = vmatprep.subr.mxu0 0.0
    %222 = vmatpush1.msra.mxu0 0.0
    %223 = vmatprep.subr.mxu0 0.0
    %224 = vmatpush1.msra.mxu0 0.0
    %225 = vmatprep.subr.mxu0 0.0
    %226 = vmatpush1.msra.mxu0 0.0
    %227 = vmatprep.subr.mxu0 0.0
    %228 = vmatpush1.msra.mxu0 0.0
    %229 = vmatprep.subr.mxu0 0.0
    %230 = vmatpush1.msra.mxu0 0.0
    %231 = vmatprep.subr.mxu0 0.0
    %232 = vmatpush1.msra.mxu0 0.0
    %233 = vmatprep.subr.mxu0 0.0
    %234 = vmatpush1.msra.mxu0 0.0
    %235 = vmatprep.subr.mxu0 0.0
    %236 = vmatpush1.msra.mxu0 0.0
    %237 = vmatprep.subr.mxu0 0.0
    %238 = vmatpush1.msra.mxu0 0.0
    %239 = vmatprep.subr.mxu0 0.0
    %240 = vmatpush1.msra.mxu0 0.0
    %241 = vmatprep.subr.mxu0 0.0
    %242 = vmatpush1.msra.mxu0 0.0
    %243 = vmatprep.subr.mxu0 0.0
    %244 = vmatpush1.msra.mxu0 0.0
    %245 = vmatprep.subr.mxu0 0.0
    %246 = vmatpush1.msra.mxu0 0.0
    %247 = vmatprep.subr.mxu0 0.0
    %248 = vmatpush1.msra.mxu0 0.0
    %249 = vmatprep.subr.mxu0 0.0
    %250 = vmatpush1.msra.mxu0 0.0
    %251 = vmatprep.subr.mxu0 0.0
    %252 = vmatpush1.msra.mxu0 0.0
    %253 = vmatprep.subr.mxu0 0.0
    %254 = vmatpush1.msra.mxu0 0.0
    %255 = vmatprep.subr.mxu0 0.0
    %256 = vmatpush1.msra.mxu0 0.0
    %257 = vmatprep.subr.mxu0 0.0
    %258 = vmatpush1.msra.mxu0 0.0
    %259 = vmatprep.subr.mxu0 0.0
    %260 = vmatpush1.msra.mxu0 0.0
    %261 = vmatprep.subr.mxu0 0.0
    %262 = vmatpush1.msra.mxu0 0.0
    %263 = vmatprep.subr.mxu0 0.0
    %264 = vmatpush1.msra.mxu0 0.0
    %265 = vmatprep.subr.mxu0 0.0
    %266 = vmatpush1.msra.mxu0 0.0
    %267 = vmatprep.subr.mxu0 0.0
    %268 = vmatpush1.msra.mxu0 0.0
    %269 = vmatprep.subr.mxu0 0.0
    %270 = vmatpush1.msra.mxu0 0.0
    %271 = vmatprep.mubr.f32.mxu0 0.0
    %272 = vmatmul.mubr.f32.gmra.mrb[0].mxu0 %v205
    %v273 = vpop.f32.mrb[0].mxu0
    %v274 = vadd.f32 0.0, %v273
    %v275 = vpop.f32.mrb[0].mxu0
    %v276 = vadd.f32 0.0, %v275
    %277 = vdwg.mxu0
    %v278 = vsel %vm36, %v274, 0.0
    %v279 = vsel %vm36, %v276, 0.0
    %v280 = vadd.f32 %v278, %v279
    %281 = vadd.xlane.f32.xlu0 %v280
    %v282 = vpop.xlane.xlu0 %281
    %v283 = vmul.f32 %v282, %v142
    %v284 = vsub.f32 %v274, %v283
    %v285 = vsub.f32 %v276, %v283
    %v286 = vmul.f32 %v284, %v284
    %v287 = vmul.f32 %v285, %v285
    %v288 = vsel %vm36, %v286, 0.0
    %v289 = vsel %vm36, %v287, 0.0
    %v290 = vadd.f32 %v288, %v289
    %291 = vadd.xlane.f32.xlu0 %v290
    %v292 = vpop.xlane.xlu0 %291
    %v293 = vmul.f32 %v292, %v142
    %v294 = vadd.f32 %v293, 1e-05
    %v295 = vrsqrt.pop %v294
    %v296 = vmul.f32 %v284, %v295
    %v297 = vmul.f32 %v285, %v295
    %v299 = vadd.f32 %v296, %v20
    %v300 = vadd.f32 %v297, %v22
    %v303 = vcombine.low %v299, %v300
    %305 = vst [vmem:[#allocation2] sm:$0xff] %v303
    %s306 = scalar_lea.vmem %s0, 8
    %v307 = vld [vmem:[%s306] sm:$0xff]
    %v309 = vcombine.high %v307, %v307
    %v310 = vsel %vm36, %v307, 0
    %v312 = vsel %vm36, %v309, 0
    %314 = vmatprep.subr.mxu0 %v312
    %315 = vmatpush1.msra.mxu0 %v310
    %316 = vmatprep.subr.mxu0 0.0
    %317 = vmatpush1.msra.mxu0 0.0
    %318 = vmatprep.subr.mxu0 0.0
    %319 = vmatpush1.msra.mxu0 0.0
    %320 = vmatprep.subr.mxu0 0.0
    %321 = vmatpush1.msra.mxu0 0.0
    %322 = vmatprep.subr.mxu0 0.0
    %323 = vmatpush1.msra.mxu0 0.0
    %324 = vmatprep.subr.mxu0 0.0
    %325 = vmatpush1.msra.mxu0 0.0
    %326 = vmatprep.subr.mxu0 0.0
    %327 = vmatpush1.msra.mxu0 0.0
    %328 = vmatprep.subr.mxu0 0.0
    %329 = vmatpush1.msra.mxu0 0.0
    %330 = vmatprep.subr.mxu0 0.0
    %331 = vmatpush1.msra.mxu0 0.0
    %332 = vmatprep.subr.mxu0 0.0
    %333 = vmatpush1.msra.mxu0 0.0
    %334 = vmatprep.subr.mxu0 0.0
    %335 = vmatpush1.msra.mxu0 0.0
    %336 = vmatprep.subr.mxu0 0.0
    %337 = vmatpush1.msra.mxu0 0.0
    %338 = vmatprep.subr.mxu0 0.0
    %339 = vmatpush1.msra.mxu0 0.0
    %340 = vmatprep.subr.mxu0 0.0
    %341 = vmatpush1.msra.mxu0 0.0
    %342 = vmatprep.subr.mxu0 0.0
    %343 = vmatpush1.msra.mxu0 0.0
    %344 = vmatprep.subr.mxu0 0.0
    %345 = vmatpush1.msra.mxu0 0.0
    %346 = vmatprep.subr.mxu0 0.0
    %347 = vmatpush1.msra.mxu0 0.0
    %348 = vmatprep.subr.mxu0 0.0
    %349 = vmatpush1.msra.mxu0 0.0
    %350 = vmatprep.subr.mxu0 0.0
    %351 = vmatpush1.msra.mxu0 0.0
    %352 = vmatprep.subr.mxu0 0.0
    %353 = vmatpush1.msra.mxu0 0.0
    %354 = vmatprep.subr.mxu0 0.0
    %355 = vmatpush1.msra.mxu0 0.0
    %356 = vmatprep.subr.mxu0 0.0
    %357 = vmatpush1.msra.mxu0 0.0
    %358 = vmatprep.subr.mxu0 0.0
    %359 = vmatpush1.msra.mxu0 0.0
    %360 = vmatprep.subr.mxu0 0.0
    %361 = vmatpush1.msra.mxu0 0.0
    %362 = vmatprep.subr.mxu0 0.0
    %363 = vmatpush1.msra.mxu0 0.0
    %364 = vmatprep.subr.mxu0 0.0
    %365 = vmatpush1.msra.mxu0 0.0
    %366 = vmatprep.subr.mxu0 0.0
    %367 = vmatpush1.msra.mxu0 0.0
    %368 = vmatprep.subr.mxu0 0.0
    %369 = vmatpush1.msra.mxu0 0.0
    %370 = vmatprep.subr.mxu0 0.0
    %371 = vmatpush1.msra.mxu0 0.0
    %372 = vmatprep.subr.mxu0 0.0
    %373 = vmatpush1.msra.mxu0 0.0
    %374 = vmatprep.subr.mxu0 0.0
    %375 = vmatpush1.msra.mxu0 0.0
    %376 = vmatprep.subr.mxu0 0.0
    %377 = vmatpush1.msra.mxu0 0.0
    %378 = vmatprep.mubr.f32.mxu0 0.0
    %379 = vmatmul.mubr.f32.gmra.mrb[0].mxu0 %v25
    %v380 = vpop.f32.mrb[0].mxu0
    %v381 = vadd.f32 0.0, %v380
    %v382 = vpop.f32.mrb[0].mxu0
    %v383 = vadd.f32 0.0, %v382
    %384 = vmatprep.mubr.f32.mxu0 0.0
    %385 = vmatmul.mubr.f32.gmra.mrb[0].mxu0 %v28
    %v386 = vpop.f32.mrb[0].mxu0
    %v387 = vadd.f32 0.0, %v386
    %v388 = vpop.f32.mrb[0].mxu0
    %v389 = vadd.f32 0.0, %v388
    %390 = vmatprep.mubr.f32.mxu0 0.0
    %391 = vmatmul.mubr.f32.gmra.mrb[0].mxu0 %v31
    %v392 = vpop.f32.mrb[0].mxu0
    %v393 = vadd.f32 0.0, %v392
    %v394 = vpop.f32.mrb[0].mxu0
    %v395 = vadd.f32 0.0, %v394
    %396 = vmatprep.mubr.f32.mxu0 0.0
    %397 = vmatmul.mubr.f32.gmra.mrb[0].mxu0 %v34
    %v398 = vpop.f32.mrb[0].mxu0
    %v399 = vadd.f32 0.0, %v398
    %v400 = vpop.f32.mrb[0].mxu0
    %v401 = vadd.f32 0.0, %v400
    %402 = vdwg.mxu0
    %v403 = vadd.f32 %v381, %v383
    %404 = vadd.xlane.f32.xlu0 %v403
    %v405 = vpop.xlane.xlu0 %404
    %v406 = vadd.f32 %v387, %v389
    %407 = vadd.xlane.f32.xlu0 %v406
    %v408 = vpop.xlane.xlu0 %407
    %v409 = vadd.f32 %v393, %v395
    %410 = vadd.xlane.f32.xlu0 %v409
    %v411 = vpop.xlane.xlu0 %410
    %v412 = vadd.f32 %v399, %v401
    %413 = vadd.xlane.f32.xlu0 %v412
    %v414 = vpop.xlane.xlu0 %413
    %v415 = vmul.f32 %v405, %v142
    %v416 = vmul.f32 %v408, %v142
    %v417 = vmul.f32 %v411, %v142
    %v418 = vmul.f32 %v414, %v142
    %v419 = vsub.f32 %v381, %v415
    %v420 = vsub.f32 %v383, %v415
    %v421 = vsub.f32 %v387, %v416
    %v422 = vsub.f32 %v389, %v416
    %v423 = vsub.f32 %v393, %v417
    %v424 = vsub.f32 %v395, %v417
    %v425 = vsub.f32 %v399, %v418
    %v426 = vsub.f32 %v401, %v418
    %v427 = vmul.f32 %v419, %v419
    %v428 = vmul.f32 %v420, %v420
    %v429 = vmul.f32 %v421, %v421
    %v430 = vmul.f32 %v422, %v422
    %v431 = vmul.f32 %v423, %v423
    %v432 = vmul.f32 %v424, %v424
    %v433 = vmul.f32 %v425, %v425
    %v434 = vmul.f32 %v426, %v426
    %v435 = vadd.f32 %v427, %v428
    %436 = vadd.xlane.f32.xlu0 %v435
    %v437 = vpop.xlane.xlu0 %436
    %v438 = vadd.f32 %v429, %v430
    %439 = vadd.xlane.f32.xlu0 %v438
    %v440 = vpop.xlane.xlu0 %439
    %v441 = vadd.f32 %v431, %v432
    %442 = vadd.xlane.f32.xlu0 %v441
    %v443 = vpop.xlane.xlu0 %442
    %v444 = vadd.f32 %v433, %v434
    %445 = vadd.xlane.f32.xlu0 %v444
    %v446 = vpop.xlane.xlu0 %445
    %v447 = vmul.f32 %v437, %v142
    %v448 = vmul.f32 %v440, %v142
    %v449 = vmul.f32 %v443, %v142
    %v450 = vmul.f32 %v446, %v142
    %v451 = vadd.f32 %v447, 1e-05
    %v452 = vadd.f32 %v448, 1e-05
    %v453 = vadd.f32 %v449, 1e-05
    %v454 = vadd.f32 %v450, 1e-05
    %v455 = vrsqrt.pop %v451
    %v456 = vrsqrt.pop %v452
    %v457 = vrsqrt.pop %v453
    %v458 = vrsqrt.pop %v454
    %v459 = vmul.f32 %v419, %v455
    %v460 = vmul.f32 %v420, %v455
    %v461 = vmul.f32 %v421, %v456
    %v462 = vmul.f32 %v422, %v456
    %v463 = vmul.f32 %v423, %v457
    %v464 = vmul.f32 %v424, %v457
    %v465 = vmul.f32 %v425, %v458
    %v466 = vmul.f32 %v426, %v458
    %v467 = vmax.f32 %v459, 0.0
    %v468 = vmax.f32 %v460, 0.0
    %v469 = vmax.f32 %v461, 0.0
    %v470 = vmax.f32 %v462, 0.0
    %v471 = vmax.f32 %v463, 0.0
    %v472 = vmax.f32 %v464, 0.0
    %v473 = vmax.f32 %v465, 0.0
    %v474 = vmax.f32 %v466, 0.0
    %475 = vmatprep.subr.mxu0 %v468
    %476 = vmatpush1.msra.mxu0 %v467
    %477 = vmatprep.subr.mxu0 %v470
    %478 = vmatpush1.msra.mxu0 %v469
    %479 = vmatprep.subr.mxu0 %v472
    %480 = vmatpush1.msra.mxu0 %v471
    %481 = vmatprep.subr.mxu0 %v474
    %482 = vmatpush1.msra.mxu0 %v473
    %483 = vmatprep.subr.mxu0 0.0
    %484 = vmatpush1.msra.mxu0 0.0
    %485 = vmatprep.subr.mxu0 0.0
    %486 = vmatpush1.msra.mxu0 0.0
    %487 = vmatprep.subr.mxu0 0.0
    %488 = vmatpush1.msra.mxu0 0.0
    %489 = vmatprep.subr.mxu0 0.0
    %490 = vmatpush1.msra.mxu0 0.0
    %491 = vmatprep.subr.mxu0 0.0
    %492 = vmatpush1.msra.mxu0 0.0
    %493 = vmatprep.subr.mxu0 0.0
    %494 = vmatpush1.msra.mxu0 0.0
    %495 = vmatprep.subr.mxu0 0.0
    %496 = vmatpush1.msra.mxu0 0.0
    %497 = vmatprep.subr.mxu0 0.0
    %498 = vmatpush1.msra.mxu0 0.0
    %499 = vmatprep.subr.mxu0 0.0
    %500 = vmatpush1.msra.mxu0 0.0
    %501 = vmatprep.subr.mxu0 0.0
    %502 = vmatpush1.msra.mxu0 0.0
    %503 = vmatprep.subr.mxu0 0.0
    %504 = vmatpush1.msra.mxu0 0.0
    %505 = vmatprep.subr.mxu0 0.0
    %506 = vmatpush1.msra.mxu0 0.0
    %507 = vmatprep.subr.mxu0 0.0
    %508 = vmatpush1.msra.mxu0 0.0
    %509 = vmatprep.subr.mxu0 0.0
    %510 = vmatpush1.msra.mxu0 0.0
    %511 = vmatprep.subr.mxu0 0.0
    %512 = vmatpush1.msra.mxu0 0.0
    %513 = vmatprep.subr.mxu0 0.0
    %514 = vmatpush1.msra.mxu0 0.0
    %515 = vmatprep.subr.mxu0 0.0
    %516 = vmatpush1.msra.mxu0 0.0
    %517 = vmatprep.subr.mxu0 0.0
    %518 = vmatpush1.msra.mxu0 0.0
    %519 = vmatprep.subr.mxu0 0.0
    %520 = vmatpush1.msra.mxu0 0.0
    %521 = vmatprep.subr.mxu0 0.0
    %522 = vmatpush1.msra.mxu0 0.0
    %523 = vmatprep.subr.mxu0 0.0
    %524 = vmatpush1.msra.mxu0 0.0
    %525 = vmatprep.subr.mxu0 0.0
    %526 = vmatpush1.msra.mxu0 0.0
    %527 = vmatprep.subr.mxu0 0.0
    %528 = vmatpush1.msra.mxu0 0.0
    %529 = vmatprep.subr.mxu0 0.0
    %530 = vmatpush1.msra.mxu0 0.0
    %531 = vmatprep.subr.mxu0 0.0
    %532 = vmatpush1.msra.mxu0 0.0
    %533 = vmatprep.subr.mxu0 0.0
    %534 = vmatpush1.msra.mxu0 0.0
    %535 = vmatprep.subr.mxu0 0.0
    %536 = vmatpush1.msra.mxu0 0.0
    %537 = vmatprep.subr.mxu0 0.0
    %538 = vmatpush1.msra.mxu0 0.0
    %539 = vmatprep.mubr.f32.mxu0 0.0
    %540 = vmatmul.mubr.f32.gmra.mrb[0].mxu0 %v205
    %v541 = vpop.f32.mrb[0].mxu0
    %v542 = vadd.f32 0.0, %v541
    %v543 = vpop.f32.mrb[0].mxu0
    %v544 = vadd.f32 0.0, %v543
    %545 = vdwg.mxu0
    %v546 = vsel %vm36, %v542, 0.0
    %v547 = vsel %vm36, %v544, 0.0
    %v548 = vadd.f32 %v546, %v547
    %549 = vadd.xlane.f32.xlu0 %v548
    %v550 = vpop.xlane.xlu0 %549
    %v551 = vmul.f32 %v550, %v142
    %v552 = vsub.f32 %v542, %v551
    %v553 = vsub.f32 %v544, %v551
    %v554 = vmul.f32 %v552, %v552
    %v555 = vmul.f32 %v553, %v553
    %v556 = vsel %vm36, %v554, 0.0
    %v557 = vsel %vm36, %v555, 0.0
    %v558 = vadd.f32 %v556, %v557
    %559 = vadd.xlane.f32.xlu0 %v558
    %v560 = vpop.xlane.xlu0 %559
    %v561 = vmul.f32 %v560, %v142
    %v562 = vadd.f32 %v561, 1e-05
    %v563 = vrsqrt.pop %v562
    %v564 = vmul.f32 %v552, %v563
    %v565 = vmul.f32 %v553, %v563
    %v567 = vadd.f32 %v564, %v307
    %v568 = vadd.f32 %v565, %v309
    %v571 = vcombine.low %v567, %v568
    %s573 = scalar_lea.vmem [#allocation2], 8
    %574 = vst [vmem:[%s573] sm:$0xff] %v571
    // Predicated region
    $region14: #{tpu_custom_call.1} parent=1 // pred_check
      _
    $region15: #{tpu_custom_call.1} parent=1 // pred_check_branch
      %576 = sbr.rel (0) target = $region17
    $region16: #{tpu_custom_call.1} parent=1 // pred_region
      %s578 = ssub.s32 256, 256
      %579 = vsyncadd [#allocation3], %s578
      %s580 = sshll.u32 [#allocation2], 4
      %s581 = int_to_ptr.vmem [resolvable:$true] %s580
      %586 = dma.vmem_to_hbm [thread:$0]  %s581, 256, %s3, [#allocation3], 128, 128, 8
    $region17: #{tpu_custom_call.1} parent=1 // pred_fallthru
      _
    // Predicated region
    $region18: #{tpu_custom_call.1} parent=1 // pred_check
      _
    $region19: #{tpu_custom_call.1} parent=1 // pred_check_branch
      %588 = sbr.rel (0) target = $region21
    $region20: #{tpu_custom_call.1} parent=1 // pred_region
      %589 = dma.done [#allocation3], 256
    $region21: #{tpu_custom_call.1} parent=1 // pred_fallthru
      _
    %590 = vsyncpa [#allocation3], 1

</llo_original>
